<compile_context>
chip_gen: v7x
topology: tpu7x:2x2x1
jax: 0.10.0
libtpu: 0.0.40
codegen_flags: <defaults>
</compile_context>

<pallas_src>
import math
import functools

import jax
import jax.numpy as jnp
from jax.experimental import pallas as pl
from jax.experimental.pallas import tpu as pltpu


def _padding_channels_kernel(x_ref, o_ref, *, ncin, ncout, mode):
    # x_ref : (TB, ncin,  TL) VMEM tile  (channels on sublanes, lane-dense spatial)
    # o_ref : (TB, ncout, TL) VMEM tile
    if mode == "zero":
        o_ref[:, :ncin, :] = x_ref[...].astype(o_ref.dtype)
        if ncout > ncin:
            o_ref[:, ncin:, :] = jnp.zeros(
                (o_ref.shape[0], ncout - ncin, o_ref.shape[2]), dtype=o_ref.dtype
            )
    elif mode == "clone":
        reps = ncout // ncin
        scale = jnp.asarray(1.0 / math.sqrt(reps), dtype=x_ref.dtype)
        # Fold the scale into each store; do NOT materialize one scaled copy of
        # the whole block and keep it live across all `reps` stores.
        for r in range(reps):
            o_ref[:, r * ncin:(r + 1) * ncin, :] = (
                x_ref[...] * scale
            ).astype(o_ref.dtype)
    else:
        raise ValueError(f"unknown mode: {mode}")


def _chip_config():
    """Generation-aware (budget, vmem_limit, dual_core) selection."""
    budget = 24 * 1024 * 1024          # conservative default (v7x-safe)
    vmem_limit = 32 * 1024 * 1024
    dual_core = False
    try:
        kind = jax.devices()[0].device_kind.lower()
        dual_core = "v7" in kind       # v7x: 2 TensorCores per chip
    except Exception:
        pass
    try:
        vmem = int(pltpu.get_tpu_info().vmem_capacity_bytes)
        if vmem >= 100 * 1024 * 1024:  # v5e / v6e: 128 MiB physical, single TC
            budget = 48 * 1024 * 1024
            vmem_limit = 64 * 1024 * 1024
            dual_core = False
        else:                          # v7x-class: 64 MiB per TC
            budget = 24 * 1024 * 1024
            vmem_limit = 32 * 1024 * 1024
            dual_core = True
    except Exception:
        pass
    return budget, vmem_limit, dual_core


def _choose_tiles(bs, ncin, ncout, spatial, itemsize, budget, dual_core):
    """Pick (batch_tile, spatial_tile) so double-buffered in+out blocks fit `budget`."""
    # Double-buffered bytes per (batch element, lane) across input + output blocks.
    per_lane = 2 * (ncin + ncout) * itemsize
    full_spatial_bytes = per_lane * spatial

    if full_spatial_bytes <= budget:
        # Preferred path: full-spatial contiguous blocks (one large DMA per buffer);
        # tile only over batch.
        tl = spatial
        max_tb = max(1, budget // full_spatial_bytes)
        if dual_core and bs >= 2:
            # Keep >=2 "parallel" grid steps for the two TensorCores, but only
            # if each half-batch output block is still >= ~2 MiB; otherwise the
            # ~0.35 us/step overhead outweighs the 2x core parallelism.
            tb_half = max(1, bs // 2)
            if tb_half * ncout * tl * itemsize >= 2 * 1024 * 1024:
                max_tb = min(max_tb, tb_half)
        tb = min(bs, max_tb)
    else:
        # Last resort: one batch element per block, split the lane axis to the
        # largest multiple of 128 that fits the budget (ragged tail via cdiv,
        # only the tail block's stores are masked).
        tb = 1
        tl = max(128, (budget // per_lane) // 128 * 128)
        tl = min(tl, spatial)
    return tb, tl


def padding_channels(x, ncout, ncin=3, mode="zero"):
    """Pallas equivalent of PaddingChannels.forward. x: (B, ncin, H, W)."""
    bs, cin, h, w = x.shape
    assert cin == ncin, f"expected ncin={ncin} input channels, got {cin}"
    if mode == "clone":
        assert ncout % ncin == 0, "clone mode requires ncout % ncin == 0"
    elif mode == "zero":
        assert ncout >= ncin, "zero mode requires ncout >= ncin"
    else:
        raise ValueError(f"unknown mode: {mode}")

    spatial = h * w
    x2 = x.reshape(bs, ncin, spatial)  # lane-dense layout (spatial on lanes)
    itemsize = jnp.dtype(x.dtype).itemsize

    budget, vmem_limit, dual_core = _chip_config()
    tb, tl = _choose_tiles(bs, ncin, ncout, spatial, itemsize, budget, dual_core)
    grid = (pl.cdiv(bs, tb), pl.cdiv(spatial, tl))

    kernel = functools.partial(
        _padding_channels_kernel, ncin=ncin, ncout=ncout, mode=mode
    )
    out = pl.pallas_call(
        kernel,
        out_shape=jax.ShapeDtypeStruct((bs, ncout, spatial), x.dtype),
        grid=grid,
        in_specs=[pl.BlockSpec((tb, ncin, tl), lambda b, l: (b, 0, l))],
        out_specs=pl.BlockSpec((tb, ncout, tl), lambda b, l: (b, 0, l)),
        compiler_params=pltpu.CompilerParams(
            dimension_semantics=("parallel", "parallel"),
            vmem_limit_bytes=vmem_limit,
        ),
    )(x2)
    return out.reshape(bs, ncout, h, w)


def _reference(x, ncout, ncin, mode):
    bs, _, h, w = x.shape
    if mode == "clone":
        reps = ncout // ncin
        return jnp.tile(x, (1, reps, 1, 1)) / jnp.sqrt(jnp.asarray(float(reps), x.dtype))
    out = jnp.zeros((bs, ncout, h, w), dtype=x.dtype)
    return out.at[:, :ncin].set(x)


if __name__ == "__main__":
    key = jax.random.PRNGKey(0)

    # --- mode='zero' (default): ncin=3 -> ncout=16, batch=2, spatial=16x16 ---
    k0, k1 = jax.random.split(key)
    x_zero = jax.random.normal(k0, (2, 3, 16, 16), dtype=jnp.float32)
    y_zero = padding_channels(x_zero, ncout=16, ncin=3, mode="zero")
    jax.block_until_ready(y_zero)
    ref_zero = _reference(x_zero, 16, 3, "zero")
    assert y_zero.shape == (2, 16, 16, 16)
    assert y_zero.dtype == x_zero.dtype
    assert jnp.allclose(y_zero, ref_zero, atol=1e-6), "zero-mode mismatch"

    # --- mode='clone': ncin=4 -> ncout=16 (ncout/ncin must be integer) ---
    x_clone = jax.random.normal(k1, (2, 4, 16, 16), dtype=jnp.float32)
    y_clone = padding_channels(x_clone, ncout=16, ncin=4, mode="clone")
    jax.block_until_ready(y_clone)
    ref_clone = _reference(x_clone, 16, 4, "clone")
    assert y_clone.shape == (2, 16, 16, 16)
    assert y_clone.dtype == x_clone.dtype
    assert jnp.allclose(y_clone, ref_clone, atol=1e-5), "clone-mode mismatch"

    print("KERNEL_OK")
</pallas_src>

<mosaic_0001>
module attributes {stable_mosaic.version = 11 : i64} {
  func.func @_padding_channels_kernel(%arg0: i32, %arg1: i32, %arg2: memref<2x3x256xf32, #tpu.memory_space<vmem>>, %arg3: memref<2x16x256xf32, #tpu.memory_space<vmem>>) attributes {dimension_semantics = [#tpu.dimension_semantics<parallel>, #tpu.dimension_semantics<parallel>], iteration_bounds = array<i64: 1, 1>, scalar_prefetch = 0 : i64, scratch_operands = 0 : i64, tpu.core_type = #tpu.core_type<tc>, window_params = [{transform_indices = @transform_0, window_bounds = array<i64: 2, 3, 256>}, {transform_indices = @transform_1, window_bounds = array<i64: 2, 16, 256>}]} {
    %c0 = arith.constant 0 : index
    %c0_0 = arith.constant 0 : index
    %c0_1 = arith.constant 0 : index
    %0 = vector.load %arg2[%c0, %c0_0, %c0_1] : memref<2x3x256xf32, #tpu.memory_space<vmem>>, vector<2x3x256xf32>
    %c0_2 = arith.constant 0 : index
    %c0_3 = arith.constant 0 : index
    %c0_4 = arith.constant 0 : index
    %1 = vector.load %arg3[%c0_2, %c0_3, %c0_4] : memref<2x16x256xf32, #tpu.memory_space<vmem>>, vector<2x3x256xf32>
    tpu.vector_store %arg3[%c0_2, %c0_3, %c0_4], %0 {strides = array<i32>} : memref<2x16x256xf32, #tpu.memory_space<vmem>>, vector<2x3x256xf32>,
    %cst = arith.constant 0.000000e+00 : f32
    %2 = vector.broadcast %cst : f32 to vector<2x13x256xf32>
    %c0_5 = arith.constant 0 : index
    %c3 = arith.constant 3 : index
    %c0_6 = arith.constant 0 : index
    %3 = vector.load %arg3[%c0_5, %c3, %c0_6] : memref<2x16x256xf32, #tpu.memory_space<vmem>>, vector<2x13x256xf32>
    tpu.vector_store %arg3[%c0_5, %c3, %c0_6], %2 {strides = array<i32>} : memref<2x16x256xf32, #tpu.memory_space<vmem>>, vector<2x13x256xf32>,
    return
  }
  func.func @transform_0(%arg0: i32, %arg1: i32) -> (i32, i32, i32) {
    %c0_i32 = arith.constant 0 : i32
    %c0_i32_0 = arith.constant 0 : i32
    return %arg0, %c0_i32, %arg1 : i32, i32, i32
  }
  func.func @transform_1(%arg0: i32, %arg1: i32) -> (i32, i32, i32) {
    %c0_i32 = arith.constant 0 : i32
    %c0_i32_0 = arith.constant 0 : i32
    return %arg0, %c0_i32, %arg1 : i32, i32, i32
  }
}

</mosaic_0001>

<llo_original>
// kernel: tpu_custom_call.1
$region0: #{tpu_custom_call.1}
  #allocation0 [shape = 'u32[]', space=smem, size = 0x4, offset = 0x4, fixed_abs, tag = 'smem constant byte address 0x4 - core index']
  #allocation1 [shape = 'u32[144,128]{1,0:T(1,128)}', space=vmem, size = 0x12000, scoped, tag = 'internal scratch']
  %s0 = inlined_call_operand.vmem [shape: f32[2,3,256], index: 0, kind: input, shape index: {}]
  %s1 = inlined_call_operand.hbm [shape: f32[2,16,256], index: 1, kind: output, shape index: {}]
  %s2 = sld [smem:[#allocation0]]
  $region14: #{tpu_custom_call.1} parent=0
    _
  %s4 = ssub.s32 1, %s2
  %s5 = scalar_select 0, %s4, %s2
  $region1: #{tpu_custom_call.1} parent=0
    #allocation2 [shape = 'u8[32768]{0}', space=vmem, size = 0x8000, scoped, tag = 'output window, operand 0, single buffered']
    #allocation3 [shape = 's32[1]{0}', space=sflag, size = 0x4, scoped, tag = 'scoped memory for tpu_custom_call.1']
    %6 = vsyncpa [#allocation3], 0
    // Predicated region
    $region2: #{tpu_custom_call.1} parent=1 // pred_check
      _
    $region3: #{tpu_custom_call.1} parent=1 // pred_check_branch
      %8 = sbr.rel (0) target = $region5
    $region4: #{tpu_custom_call.1} parent=1 // pred_region
      _
    $region5: #{tpu_custom_call.1} parent=1 // pred_fallthru
      _
    %v9 = vld [vmem:[%s0] sm:$0x77]
    %v10 = vld [vmem:[%s0 + $0x8] sm:$0x77]
    %v13 = vcombine.high %v9, %v9
    %v14 = vcombine.high %v10, %v10
    %17 = vst [vmem:[#allocation2] sm:$0x7] %v9
    %18 = vst [vmem:[#allocation2 + $0x8] sm:$0x7] %v13
    %19 = vst [vmem:[#allocation2 + $0x20] sm:$0x7] %v10
    %20 = vst [vmem:[#allocation2 + $0x28] sm:$0x7] %v14
    %21 = vst [vmem:[#allocation2] sm:$0xf8] 0.0
    %22 = vst [vmem:[#allocation2 + $0x8] sm:$0xf8] 0.0
    %23 = vst [vmem:[#allocation2 + $0x10] sm:$0xff] 0.0
    %24 = vst [vmem:[#allocation2 + $0x18] sm:$0xff] 0.0
    %25 = vst [vmem:[#allocation2 + $0x20] sm:$0xf8] 0.0
    %26 = vst [vmem:[#allocation2 + $0x28] sm:$0xf8] 0.0
    %27 = vst [vmem:[#allocation2 + $0x30] sm:$0xff] 0.0
    %28 = vst [vmem:[#allocation2 + $0x38] sm:$0xff] 0.0
    // Predicated region
    $region6: #{tpu_custom_call.1} parent=1 // pred_check
      _
    $region7: #{tpu_custom_call.1} parent=1 // pred_check_branch
      %30 = sbr.rel (0) target = $region9
    $region8: #{tpu_custom_call.1} parent=1 // pred_region
      %s32 = ssub.s32 1024, 1024
      %33 = vsyncadd [#allocation3], %s32
      %s34 = sshll.u32 [#allocation2], 4
      %s35 = int_to_ptr.vmem [resolvable:$true] %s34
      %40 = dma.vmem_to_hbm [thread:$0]  %s35, 1024, %s1, [#allocation3], 256, 256, 16
    $region9: #{tpu_custom_call.1} parent=1 // pred_fallthru
      _
    // Predicated region
    $region10: #{tpu_custom_call.1} parent=1 // pred_check
      _
    $region11: #{tpu_custom_call.1} parent=1 // pred_check_branch
      %42 = sbr.rel (0) target = $region13
    $region12: #{tpu_custom_call.1} parent=1 // pred_region
      %43 = dma.done [#allocation3], 1024
    $region13: #{tpu_custom_call.1} parent=1 // pred_fallthru
      _
    %44 = vsyncpa [#allocation3], 1

</llo_original>
